<compile_context>
chip_gen: v7x
topology: tpu7x:2x2x1
jax: 0.10.0
libtpu: 0.0.40
codegen_flags: <defaults>
</compile_context>

<pallas_src>
import functools

import jax
import jax.numpy as jnp
from jax.experimental import pallas as pl
from jax.experimental.pallas import tpu as pltpu


def _lm_crit_kernel(logp_ref, tgt_ref, out_ref, acc_ref):
    # logp_ref: (tile_n, V) block of log-probs, native dtype.
    # tgt_ref : (tile_n, 1) int32 streamed target column (zero-padded tail).
    # out_ref : (1, 1, 1) float32 per-split partial numerator.
    # acc_ref : (1, 1) float32 per-core scratch accumulator.
    i = pl.program_id(1)

    @pl.when(i == 0)
    def _init():
        acc_ref[...] = jnp.zeros_like(acc_ref)

    logp = logp_ref[...]                                  # (tile_n, V)
    tgt = tgt_ref[...]                                    # (tile_n, 1) int32

    # Fold the padding mask into the target: pad rows (tgt == 0) become -1,
    # which never matches a vocab id, so they contribute nothing.  This also
    # keeps unspecified data in ragged / duplicated tail blocks out of the sum
    # because their targets are zero-padded by the wrapper.
    tgt_eff = jnp.where(tgt != 0, tgt, -1)                # (tile_n, 1)
    vocab_ids = jax.lax.broadcasted_iota(jnp.int32, (1, logp.shape[1]), 1)
    picked = jnp.where(vocab_ids == tgt_eff, logp, jnp.zeros_like(logp))

    # Per-row reduce in the native dtype is exact (<= 1 nonzero per row);
    # cross-row / cross-tile accumulation happens in float32.
    row_vals = jnp.sum(picked, axis=1, keepdims=True)     # (tile_n, 1)
    acc_ref[...] += jnp.sum(row_vals.astype(jnp.float32))

    @pl.when(i == pl.num_programs(1) - 1)
    def _finalize():
        out_ref[...] = acc_ref[...].reshape(1, 1, 1)


def _vmem_capacity_bytes():
    """Physical VMEM per TensorCore; conservative 64 MiB (v7x) fallback."""
    try:
        cap = int(pltpu.get_tpu_info().vmem_capacity_bytes)
        if cap > 0:
            return cap
    except Exception:
        pass
    return 64 * 1024 * 1024


def _tensorcores_per_device():
    """TensorCores a 'parallel' grid axis can shard across; 1 if unknown."""
    try:
        info = pltpu.get_tpu_info()
        for attr in ("num_cores", "core_count", "num_tensorcores",
                     "tensorcores_per_chip"):
            v = getattr(info, attr, None)
            if isinstance(v, int) and v > 0:
                return v
    except Exception:
        pass
    try:
        kind = jax.devices()[0].device_kind.lower()
        if any(t in kind for t in ("v7", "v4", "v5p")):
            return 2
    except Exception:
        pass
    return 1


def _pick_tile_n(n_rows, vocab, itemsize, vmem_cap):
    """Row-tile size: multi-MiB logp blocks, double-buffered pair under budget."""
    sub = max(8, 32 // itemsize)            # sublane packing: 8 f32, 16 bf16, 32 int8
    row_bytes = vocab * itemsize            # one streamed log-prob row
    tgt_row_bytes = 128 * 4                 # (tile_n, 1) int32 is lane-padded in VMEM
    target_bytes = (8 << 20) if vmem_cap >= (96 << 20) else (4 << 20)
    pair_budget = int(vmem_cap * 0.55)      # 2x double-buffered (logp + target) blocks
    t = max(sub, target_bytes // row_bytes)
    t = min(t, max(sub, pair_budget // (2 * (row_bytes + tgt_row_bytes))))
    t = min(t, pl.cdiv(n_rows, sub) * sub)  # no point exceeding the row count
    t = max(sub, (t // sub) * sub)
    return int(t)


@functools.partial(jax.jit, static_argnames=("tile_n", "num_splits"))
def language_model_criterion(logprobs, target, tile_n=None, num_splits=None):
    """logprobs: (B, T, V) f32/bf16 log-probs; target: (B, Tt) ints, Tt >= T."""
    B, T, V = logprobs.shape
    target = target[:, :T]                                  # target[:, :input.size(1)]
    n = B * T

    logp_flat = logprobs.reshape(n, V)                      # streamed as-is
    tgt_col = target.reshape(n, 1).astype(jnp.int32)

    # Denominator on the tiny target array (== sum(mask) in the reference).
    den = jnp.sum((tgt_col != 0).astype(jnp.float32))

    vmem_cap = _vmem_capacity_bytes()
    if tile_n is None:
        tile_n = _pick_tile_n(n, V, logprobs.dtype.itemsize, vmem_cap)
    tiles_total = pl.cdiv(n, tile_n)

    if num_splits is None:
        num_splits = _tensorcores_per_device()
    num_splits = max(1, min(int(num_splits), tiles_total))
    tiles_per_split = pl.cdiv(tiles_total, num_splits)
    grid = (num_splits, tiles_per_split)

    # Zero-pad only the tiny target column to full grid coverage; pad value 0
    # is the padding token, so padded rows are masked out in the kernel.
    n_pad = num_splits * tiles_per_split * tile_n
    if n_pad > n:
        tgt_col = jnp.pad(tgt_col, ((0, n_pad - n), (0, 0)))

    # Duplicate (clamped) log-prob blocks pair with all-zero target blocks and
    # contribute nothing; the last real block's ragged tail is likewise masked.
    clamp = (num_splits * tiles_per_split) != tiles_total

    def logp_index(c, i):
        blk = c * tiles_per_split + i
        if clamp:
            blk = jnp.minimum(blk, tiles_total - 1)
        return (blk, 0)

    def tgt_index(c, i):
        return (c * tiles_per_split + i, 0)

    # Explicit, generation-aware VMEM budget.
    blk_bytes = tile_n * V * logprobs.dtype.itemsize
    tgt_blk_bytes = tile_n * 128 * 4                        # lane-padded int32 column
    needed = 2 * (blk_bytes + tgt_blk_bytes) + (1 << 20)
    vmem_limit = int(min(int(vmem_cap * 0.9), max(needed, 8 * 1024 * 1024)))

    partials = pl.pallas_call(
        _lm_crit_kernel,
        out_shape=jax.ShapeDtypeStruct((num_splits, 1, 1), jnp.float32),
        grid_spec=pltpu.PrefetchScalarGridSpec(
            num_scalar_prefetch=0,
            grid=grid,
            in_specs=[
                pl.BlockSpec((tile_n, V), logp_index),       # streamed log-probs
                pl.BlockSpec((tile_n, 1), tgt_index),        # streamed targets
            ],
            out_specs=pl.BlockSpec((1, 1, 1), lambda c, i: (c, 0, 0)),
            scratch_shapes=[
                pltpu.VMEM((1, 1), jnp.float32),             # per-core numerator acc
            ],
        ),
        compiler_params=pltpu.CompilerParams(
            dimension_semantics=("parallel", "arbitrary"),
            vmem_limit_bytes=vmem_limit,
        ),
    )(logp_flat, tgt_col)

    # sum(-gather * mask) / sum(mask); 0/0 -> NaN matches the PyTorch reference.
    return -(jnp.sum(partials) / den)


def _reference(logprobs, target):
    """Pure-JAX reference matching the PyTorch forward exactly."""
    B, T, V = logprobs.shape
    target = target[:, :T]
    inp = logprobs.reshape(-1, V).astype(jnp.float32)
    tgt = target.reshape(-1, 1)
    mask = (tgt != 0).astype(jnp.float32)
    gathered = jnp.take_along_axis(inp, tgt, axis=1)
    out = -gathered * mask
    return jnp.sum(out) / jnp.sum(mask)


if __name__ == "__main__":
    key = jax.random.PRNGKey(0)
    k1, k2, k3, k4, k5, k6 = jax.random.split(key, 6)

    # Case 1: small f32 case (B=2, T=8, V=32), target longer than the input.
    B, T, V = 2, 8, 32
    Tt = T + 2
    logits = jax.random.normal(k1, (B, T, V), dtype=jnp.float32)
    logprobs = jax.nn.log_softmax(logits, axis=-1)
    target = jax.random.randint(k2, (B, Tt), 0, V, dtype=jnp.int32)
    target = target.at[:, -3:].set(0)        # some padding positions
    target = target.at[:, 0].set(3)          # guarantee at least one non-pad token
    loss = jax.block_until_ready(language_model_criterion(logprobs, target))
    ref = _reference(logprobs, target)
    assert jnp.allclose(loss, ref, rtol=1e-5, atol=1e-6), (loss, ref)

    # Case 2: ragged multi-tile, forced 2-way split (exercises the clamped
    # duplicate tail block and per-split partial sums).
    B2, T2, V2 = 4, 25, 160
    lg2 = jax.nn.log_softmax(jax.random.normal(k3, (B2, T2, V2), jnp.float32), -1)
    tg2 = jax.random.randint(k4, (B2, T2 + 3), 0, V2, dtype=jnp.int32)
    tg2 = tg2.at[:, :2].set(0)
    tg2 = tg2.at[:, 5].set(7)
    loss2 = jax.block_until_ready(
        language_model_criterion(lg2, tg2, tile_n=16, num_splits=2))
    ref2 = _reference(lg2, tg2)
    assert jnp.allclose(loss2, ref2, rtol=1e-5, atol=1e-6), (loss2, ref2)

    # Case 3: bfloat16 log-probs (native-dtype per-row reduce + f32 accumulate).
    B3, T3, V3 = 2, 16, 64
    lg3 = jax.nn.log_softmax(
        jax.random.normal(k5, (B3, T3, V3), jnp.float32), -1).astype(jnp.bfloat16)
    tg3 = jax.random.randint(k6, (B3, T3), 0, V3, dtype=jnp.int32)
    tg3 = tg3.at[:, 1].set(9)
    loss3 = jax.block_until_ready(language_model_criterion(lg3, tg3))
    ref3 = _reference(lg3, tg3)
    assert jnp.allclose(loss3, ref3, rtol=1e-4, atol=1e-4), (loss3, ref3)

    print("KERNEL_OK")
</pallas_src>

<mosaic_0001>
module attributes {stable_mosaic.version = 11 : i64} {
  func.func @_lm_crit_kernel(%arg0: i32, %arg1: i32, %arg2: memref<16x32xf32, #tpu.memory_space<vmem>>, %arg3: memref<16x1xi32, #tpu.memory_space<vmem>>, %arg4: memref<1x1x1xf32, #tpu.memory_space<vmem>>, %arg5: memref<1x1xf32, #tpu.memory_space<vmem>>) attributes {dimension_semantics = [#tpu.dimension_semantics<parallel>, #tpu.dimension_semantics<arbitrary>], iteration_bounds = array<i64: 1, 1>, scalar_prefetch = 0 : i64, scratch_operands = 1 : i64, tpu.core_type = #tpu.core_type<tc>, window_params = [{transform_indices = @transform_0, window_bounds = array<i64: 16, 32>}, {transform_indices = @transform_1, window_bounds = array<i64: 16, 1>}, {transform_indices = @transform_2, window_bounds = array<i64: 1, 1, 1>}]} {
    %c0_i32 = arith.constant 0 : i32
    %0 = arith.cmpi eq, %arg1, %c0_i32 : i32
    %1 = arith.extui %0 : i1 to i32
    %c0_i32_0 = arith.constant 0 : i32
    %2 = arith.cmpi ne, %1, %c0_i32_0 : i32
    scf.if %2 {
      %cst_13 = arith.constant 0.000000e+00 : f32
      %28 = vector.broadcast %cst_13 : f32 to vector<1x1xf32>
      %c0_14 = arith.constant 0 : index
      %c0_15 = arith.constant 0 : index
      %29 = vector.load %arg5[%c0_14, %c0_15] : memref<1x1xf32, #tpu.memory_space<vmem>>, vector<1x1xf32>
      tpu.vector_store %arg5[%c0_14, %c0_15], %28 {strides = array<i32>} : memref<1x1xf32, #tpu.memory_space<vmem>>, vector<1x1xf32>,
    } else {
    }
    %c0 = arith.constant 0 : index
    %c0_1 = arith.constant 0 : index
    %3 = vector.load %arg2[%c0, %c0_1] : memref<16x32xf32, #tpu.memory_space<vmem>>, vector<16x32xf32>
    %c0_2 = arith.constant 0 : index
    %c0_3 = arith.constant 0 : index
    %4 = vector.load %arg3[%c0_2, %c0_3] : memref<16x1xi32, #tpu.memory_space<vmem>>, vector<16x1xi32>
    %c0_i32_4 = arith.constant 0 : i32
    %5 = vector.broadcast %c0_i32_4 : i32 to vector<16x1xi32>
    %6 = arith.cmpi ne, %4, %5 : vector<16x1xi32>
    %c-1_i32 = arith.constant -1 : i32
    %7 = vector.broadcast %c-1_i32 : i32 to vector<16x1xi32>
    %8 = arith.select %6, %4, %7 : vector<16x1xi1>, vector<16x1xi32>
    %9 = tpu.iota {dimensions = array<i32: 1>} : vector<1x32xi32>
    %10 = vector.broadcast %9 : vector<1x32xi32> to vector<16x32xi32>
    %11 = vector.broadcast %8 : vector<16x1xi32> to vector<16x32xi32>
    %12 = arith.cmpi eq, %10, %11 : vector<16x32xi32>
    %cst = arith.constant 0.000000e+00 : f32
    %13 = vector.broadcast %cst : f32 to vector<16x32xf32>
    %14 = arith.select %12, %3, %13 : vector<16x32xi1>, vector<16x32xf32>
    %cst_5 = arith.constant dense<0.000000e+00> : vector<16xf32>
    %15 = vector.multi_reduction <add>, %14, %cst_5 [1] : vector<16x32xf32> to vector<16xf32>
    %16 = vector.shape_cast %15 : vector<16xf32> to vector<16x1xf32>
    %c0_6 = arith.constant 0 : index
    %c0_7 = arith.constant 0 : index
    %17 = vector.load %arg5[%c0_6, %c0_7] : memref<1x1xf32, #tpu.memory_space<vmem>>, vector<1x1xf32>
    %18 = vector.shape_cast %16 : vector<16x1xf32> to vector<1x16x1xf32>
    %cst_8 = arith.constant dense<0.000000e+00> : vector<1xf32>
    %19 = vector.multi_reduction <add>, %18, %cst_8 [1, 2] : vector<1x16x1xf32> to vector<1xf32>
    %20 = vector.shape_cast %19 : vector<1xf32> to vector<1x1x1xf32>
    %21 = vector.extract %20[0, 0, 0] : f32 from vector<1x1x1xf32>
    %22 = vector.broadcast %21 : f32 to vector<1x1xf32>
    %23 = arith.addf %17, %22 : vector<1x1xf32>
    %c0_9 = arith.constant 0 : index
    %c0_10 = arith.constant 0 : index
    %24 = vector.load %arg5[%c0_9, %c0_10] : memref<1x1xf32, #tpu.memory_space<vmem>>, vector<1x1xf32>
    tpu.vector_store %arg5[%c0_9, %c0_10], %23 {strides = array<i32>} : memref<1x1xf32, #tpu.memory_space<vmem>>, vector<1x1xf32>,
    %c0_i32_11 = arith.constant 0 : i32
    %25 = arith.cmpi eq, %arg1, %c0_i32_11 : i32
    %26 = arith.extui %25 : i1 to i32
    %c0_i32_12 = arith.constant 0 : i32
    %27 = arith.cmpi ne, %26, %c0_i32_12 : i32
    scf.if %27 {
      %c0_13 = arith.constant 0 : index
      %c0_14 = arith.constant 0 : index
      %28 = vector.load %arg5[%c0_13, %c0_14] : memref<1x1xf32, #tpu.memory_space<vmem>>, vector<1x1xf32>
      %29 = vector.shape_cast %28 : vector<1x1xf32> to vector<1x1x1xf32>
      %c0_15 = arith.constant 0 : index
      %c0_16 = arith.constant 0 : index
      %c0_17 = arith.constant 0 : index
      %30 = vector.load %arg4[%c0_15, %c0_16, %c0_17] : memref<1x1x1xf32, #tpu.memory_space<vmem>>, vector<1x1x1xf32>
      tpu.vector_store %arg4[%c0_15, %c0_16, %c0_17], %29 {strides = array<i32>} : memref<1x1x1xf32, #tpu.memory_space<vmem>>, vector<1x1x1xf32>,
    } else {
    }
    return
  }
  func.func @transform_0(%arg0: i32, %arg1: i32) -> (i32, i32) {
    %c1_i32 = arith.constant 1 : i32
    %0 = arith.muli %arg0, %c1_i32 : i32
    %1 = arith.addi %0, %arg1 : i32
    %c0_i32 = arith.constant 0 : i32
    %c0_i32_0 = arith.constant 0 : i32
    return %1, %c0_i32 : i32, i32
  }
  func.func @transform_1(%arg0: i32, %arg1: i32) -> (i32, i32) {
    %c1_i32 = arith.constant 1 : i32
    %0 = arith.muli %arg0, %c1_i32 : i32
    %1 = arith.addi %0, %arg1 : i32
    %c0_i32 = arith.constant 0 : i32
    %c0_i32_0 = arith.constant 0 : i32
    return %1, %c0_i32 : i32, i32
  }
  func.func @transform_2(%arg0: i32, %arg1: i32) -> (i32, i32, i32) {
    %c0_i32 = arith.constant 0 : i32
    %c0_i32_0 = arith.constant 0 : i32
    %c0_i32_1 = arith.constant 0 : i32
    return %arg0, %c0_i32, %c0_i32_0 : i32, i32, i32
  }
}

</mosaic_0001>

<llo_original>
// kernel: language_model_criterion.1
$region0: #{language_model_criterion.1}
  #allocation0 [shape = 'u32[]', space=smem, size = 0x4, offset = 0x4, fixed_abs, tag = 'smem constant byte address 0x4 - core index']
  #allocation1 [shape = 'u32[144,128]{1,0:T(1,128)}', space=vmem, size = 0x12000, scoped, tag = 'internal scratch']
  #allocation2 [shape = 'f32[1,1]{1,0:T(1,128)}', space=vmem, size = 0x200, scoped, tag = 'scratch operand']
  %s0 = inlined_call_operand.vmem [shape: f32[16,32], index: 0, kind: input, shape index: {}]
  %s1 = inlined_call_operand.vmem [shape: s32[16,1], index: 1, kind: input, shape index: {}]
  %s2 = inlined_call_operand.hbm [shape: f32[1,1,1], index: 2, kind: output, shape index: {}]
  %s3 = sld [smem:[#allocation0]]
  $region26: #{language_model_criterion.1} parent=0
    _
  %s5 = ssub.s32 1, %s3
  %s6 = scalar_select 0, %s5, %s3
  $region1: #{language_model_criterion.1} parent=0
    #allocation3 [shape = 'u8[512]{0}', space=vmem, size = 0x400, scoped, tag = 'output window, operand 0, single buffered']
    #allocation4 [shape = 's32[1]{0}', space=sflag, size = 0x4, scoped, tag = 'scoped memory for language_model_criterion.1']
    %7 = vsyncpa [#allocation4], 0
    // Predicated region
    $region2: #{language_model_criterion.1} parent=1 // pred_check
      _
    $region3: #{language_model_criterion.1} parent=1 // pred_check_branch
      %9 = sbr.rel (0) target = $region5
    $region4: #{language_model_criterion.1} parent=1 // pred_region
      %s10 = sadd.s32 0, 0
      %s11 = smul.u32 2, %s10
      %p12 = scmp.lt.s32.totalorder %s11, 1
      %s13 = scalar_select %p12, %s11, 1
      %s14 = smul.addr %s13, 8
      %s15 = scalar_lea.vmem %s0, %s14
      %s16 = sadd.s32 0, 0
      %s17 = smul.u32 2, %s16
    $region5: #{language_model_criterion.1} parent=1 // pred_fallthru
      _
    // Predicated region
    $region6: #{language_model_criterion.1} parent=1 // pred_check
      _
    $region7: #{language_model_criterion.1} parent=1 // pred_check_branch
      %19 = sbr.rel (0) target = $region9
    $region8: #{language_model_criterion.1} parent=1 // pred_region
      %s20 = sadd.s32 0, 0
      %s21 = smul.u32 2, %s20
      %p22 = scmp.lt.s32.totalorder %s21, 1
      %s23 = scalar_select %p22, %s21, 1
      %s24 = smul.addr %s23, 8
      %s25 = scalar_lea.vmem %s1, %s24
      %s26 = sadd.s32 0, 0
      %s27 = smul.u32 2, %s26
    $region9: #{language_model_criterion.1} parent=1 // pred_fallthru
      _
    %s28 = sadd.s32 0, 0
    %s29 = smul.u32 2, %s28
    %p30 = scmp.lt.s32.totalorder %s29, 1
    %s31 = scalar_select %p30, %s29, 1
    %s32 = smul.addr %s31, 8
    %s33 = scalar_lea.vmem %s0, %s32
    %s34 = sadd.s32 0, 0
    %s35 = smul.u32 2, %s34
    %p36 = scmp.lt.s32.totalorder %s35, 1
    %s37 = scalar_select %p36, %s35, 1
    %s38 = smul.addr %s37, 8
    %s39 = scalar_lea.vmem %s1, %s38
    %s40 = sadd.s32 0, 0
    %s41 = smul.u32 2, %s40
    %p42 = scmp.lt.s32.totalorder %s41, 1
    %s43 = scalar_select %p42, %s41, 1
    %s44 = smul.addr %s43, 8
    %s45 = scalar_lea.vmem %s0, %s44
    %s46 = sadd.s32 0, 0
    %s47 = smul.u32 2, %s46
    %s48 = sadd.s32 0, 0
    %s49 = smul.u32 2, %s48
    %p50 = scmp.lt.s32.totalorder %s49, 1
    %s51 = scalar_select %p50, %s49, 1
    %s52 = smul.addr %s51, 8
    %s53 = scalar_lea.vmem %s1, %s52
    %s54 = sadd.s32 0, 0
    %s55 = smul.u32 2, %s54
    %p56 = scmp.eq.s32.totalorder 0, 0
    // Predicated region
    $region10: #{language_model_criterion.1} parent=1 // pred_check
      %p57 = pneg %p56
    $region11: #{language_model_criterion.1} parent=1 // pred_check_branch
      %59 = sbr.rel (%p57) target = $region13
    $region12: #{language_model_criterion.1} parent=1 // pred_region
      %vm60 = vcmask 0
      %61 = vst.msk [vmem:[#allocation2] sm:$0x1] %vm60, 0.0
    $region13: #{language_model_criterion.1} parent=1 // pred_fallthru
      _
    %v62 = vld [vmem:[%s45] sm:$0xff]
    %v63 = vld [vmem:[%s45 + $0x8] sm:$0xff]
    %v64 = vld [vmem:[%s53] sm:$0xff]
    %v65 = vld [vmem:[%s53 + $0x8] sm:$0xff]
    %vm66 = vcmp.ne.s32.totalorder %v64, 0
    %vm67 = vcmp.ne.s32.totalorder %v65, 0
    %v68 = vsel %vm66, %v64, 4294967295
    %v69 = vsel %vm67, %v65, 4294967295
    %v70 = vlaneseq
    %v71 = vand.u32 %v70, 127
    %72 = vset.pattern.permute.xlu0 0
    %73 = vperm.xlu0 %72, %v68
    %v74 = vpop.permute.xlu0 %73
    %75 = vset.pattern.permute.xlu0 0
    %76 = vperm.xlu0 %75, %v69
    %v77 = vpop.permute.xlu0 %76
    %vm78 = vcmp.eq.s32.totalorder %v71, %v74
    %vm79 = vcmp.eq.s32.totalorder %v71, %v77
    %v80 = vsel %vm78, %v62, 0.0
    %v81 = vsel %vm79, %v63, 0.0
    %vm82 = vcmask 261120
    %v83 = vsel %vm82, %v80, 0.0
    %84 = vadd.xlane.f32.xlu0 %v83
    %v85 = vpop.xlane.xlu0 %84
    %v86 = vsel %vm82, %v81, 0.0
    %87 = vadd.xlane.f32.xlu0 %v86
    %v88 = vpop.xlane.xlu0 %87
    %v89 = vld [vmem:[#allocation2] sm:$0x1]
    %vm90 = vcmask 7168
    %v91 = vsel %vm90, %v85, 0.0
    %v92 = vsel %vm90, %v88, 0.0
    %v93 = vadd.f32 %v91, %v92
    %94 = vadd.xlane.f32.xlu0 %v93
    %v95 = vpop.xlane.xlu0 %94
    %v96 = vrot.slane %v95, 4
    %v97 = vadd.f32 %v95, %v96
    %v98 = vrot.slane %v97, 2
    %v99 = vadd.f32 %v97, %v98
    %v100 = vrot.slane %v99, 1
    %v101 = vadd.f32 %v99, %v100
    %s102 = vtos %v101
    %v103 = vstv %s102
    %v104 = vadd.f32 %v89, %v103
    %vm105 = vcmask 0
    %106 = vst.msk [vmem:[#allocation2] sm:$0x1] %vm105, %v104
    // Predicated region
    $region14: #{language_model_criterion.1} parent=1 // pred_check
      %p107 = pneg %p56
    $region15: #{language_model_criterion.1} parent=1 // pred_check_branch
      %109 = sbr.rel (%p107) target = $region17
    $region16: #{language_model_criterion.1} parent=1 // pred_region
      %v110 = vld [vmem:[#allocation2] sm:$0x1]
      %111 = vst.msk [vmem:[#allocation3] sm:$0x1] %vm105, %v110
    $region17: #{language_model_criterion.1} parent=1 // pred_fallthru
      _
    // Predicated region
    $region18: #{language_model_criterion.1} parent=1 // pred_check
      _
    $region19: #{language_model_criterion.1} parent=1 // pred_check_branch
      %113 = sbr.rel (0) target = $region21
    $region20: #{language_model_criterion.1} parent=1 // pred_region
      %s115 = ssub.s32 16, 16
      %116 = vsyncadd [#allocation4], %s115
      %s118 = sshll.u32 [#allocation3], 4
      %s119 = int_to_ptr.vmem [resolvable:$true] %s118
      %121 = dma.vmem_to_hbm [thread:$0]  %s119, 16, %s2, [#allocation4]
    $region21: #{language_model_criterion.1} parent=1 // pred_fallthru
      _
    // Predicated region
    $region22: #{language_model_criterion.1} parent=1 // pred_check
      _
    $region23: #{language_model_criterion.1} parent=1 // pred_check_branch
      %123 = sbr.rel (0) target = $region25
    $region24: #{language_model_criterion.1} parent=1 // pred_region
      %124 = dma.done [#allocation4], 16
    $region25: #{language_model_criterion.1} parent=1 // pred_fallthru
      _
    %125 = vsyncpa [#allocation4], 1

</llo_original>
